<compile_context>
chip_gen: v6e
topology: v6e:2x2x1
jax: 0.10.0
libtpu: 0.0.40
codegen_flags: <defaults>
</compile_context>

<pallas_src>
import numpy as np
import jax
import jax.numpy as jnp
from jax.experimental import pallas as pl
from jax.experimental.pallas import tpu as pltpu


def _round_up(n, m):
    return (n + m - 1) // m * m


def _vmem_block_bytes(rows, cols, dtype):
    """Padded VMEM footprint of one (rows, cols) block (128-lane pad, sublane pack)."""
    d = jnp.dtype(dtype)
    pack = max(1, 4 // d.itemsize)
    return _round_up(int(rows), 8 * pack) * _round_up(int(cols), 128) * d.itemsize


def _make_mlp_kernel(n_stream):
    """Kernel factory: n_stream streamed activation tiles, W1 row-split per stream."""

    def kernel(*refs):
        in_refs = refs[:n_stream]
        w1_refs = refs[n_stream:2 * n_stream]
        b1_ref, w2_ref, b2_ref, w3_ref, b3_ref, out_ref = refs[2 * n_stream:]

        # Layer 1: sum of partial matmuls == concat(x, obs, [step|actions]) @ W1.
        # Streams (and W1 pieces) may be bf16; accumulation is always f32.
        h1 = jnp.dot(in_refs[0][...], w1_refs[0][...],
                     preferred_element_type=jnp.float32)
        for a_ref, w_ref in zip(in_refs[1:], w1_refs[1:]):
            h1 = h1 + jnp.dot(a_ref[...], w_ref[...],
                              preferred_element_type=jnp.float32)
        h1 = jnp.maximum(h1 + b1_ref[...], 0.0)

        # Layers 2-3 stay f32 (weights kept f32; no downcast of h1/h2) so precision
        # loss is confined to input quantization when streaming bf16.
        h2 = jnp.dot(h1, w2_ref[...], preferred_element_type=jnp.float32)
        h2 = jnp.maximum(h2 + b2_ref[...], 0.0)

        out = jnp.dot(h2, w3_ref[...], preferred_element_type=jnp.float32)
        out_ref[...] = (out + b3_ref[...]).astype(out_ref.dtype)

    return kernel


def diffusion_model_forward(x, obs, step, actions, params, *,
                            block_b=8192,
                            compute_dtype=jnp.bfloat16,
                            vmem_limit_bytes=None):
    """Mirrors DiffusionModel.forward.

    x:       (B, x_dim)   float32
    obs:     (B, obs_c)   float32
    step:    (B, 1)       float32
    actions: (B, ...)     or None (flattened from dim 1)

    If actions is None the backbone consumes `obs` alone (the torch module does not
    reassign `obs` in that branch); otherwise it consumes the implicit concatenation
    of (x, obs, step, flatten(actions)).
    """
    x = jnp.asarray(x, jnp.float32)
    obs = jnp.asarray(obs, jnp.float32)
    B = int(obs.shape[0])
    step = jnp.asarray(step, jnp.float32).reshape(B, -1)

    if actions is not None:
        actions = jnp.asarray(actions, jnp.float32).reshape(actions.shape[0], -1)
        # Merge the two narrow tails (step: 1 col, actions: a few cols) into one
        # streamed tensor: fewer lane-sparse blocks / DMA chains, and the concat
        # fuses with the bf16 cast into a single wrapper pass.
        tail = jnp.concatenate([step, actions], axis=1)
        streams = [x, obs, tail]
    else:
        streams = [obs]

    w1, b1, w2, b2, w3, b3 = (jnp.asarray(p, jnp.float32) for p in params)
    dims = [int(s.shape[1]) for s in streams]
    if int(w1.shape[0]) != sum(dims):
        raise ValueError(
            f"W1 has {int(w1.shape[0])} input rows but streamed inputs provide {sum(dims)}")

    # Row-split W1 so the concatenated input never hits HBM.
    offs = [0]
    for d in dims:
        offs.append(offs[-1] + d)
    w1_pieces = [w1[offs[i]:offs[i + 1]] for i in range(len(streams))]

    hidden = int(w1.shape[1])
    latent = int(w2.shape[1])
    out_dim = int(w3.shape[1])
    in_dim = sum(dims)

    cdt = jnp.dtype(compute_dtype)
    sub = 8 * max(1, 4 // cdt.itemsize)         # sublane granularity (8 f32, 16 bf16)

    # bf16 streaming (default) halves the dominant HBM read traffic; only the
    # streams and W1 are cast, W2/W3/biases stay f32.
    if cdt != jnp.dtype(jnp.float32):
        streams = [s.astype(cdt) for s in streams]
        w1_pieces = [w.astype(cdt) for w in w1_pieces]

    B_pad = _round_up(B, sub)
    if B_pad != B:
        streams = [jnp.pad(s, ((0, B_pad - B), (0, 0))) for s in streams]
    # NOTE: padded rows compute garbage but are sliced off at the end; no cross-row
    # reduction happens in-kernel, so this is benign.

    # Tile: large enough to amortize the ~0.35 us per-grid-step overhead, small
    # enough to (a) fit v7x's 64 MiB/TC with double buffering and (b) leave >= 2
    # grid steps so ("parallel",) can use both v7x TensorCores.
    half = _round_up(-(-B_pad // 2), sub)
    tb = max(sub, min(_round_up(int(block_b), sub), half))
    grid = (pl.cdiv(B_pad, tb),)                # last tile may be partial -> masked

    if vmem_limit_bytes is None:
        stream_blk = sum(_vmem_block_bytes(tb, d, cdt) for d in dims)
        out_blk = _vmem_block_bytes(tb, out_dim, jnp.float32)
        weight_blk = (sum(_vmem_block_bytes(w.shape[0], w.shape[1], w.dtype)
                          for w in w1_pieces)
                      + sum(_vmem_block_bytes(a.shape[0], a.shape[1], a.dtype)
                            for a in (b1, w2, b2, w3, b3)))
        need = 2 * (stream_blk + out_blk + weight_blk) + (1 << 20)
        # 1.5x headroom, floor at the common 32 MiB scoped default, cap at v7x's
        # 64 MiB/TC physical VMEM.
        vmem_limit_bytes = min(max(int(need * 1.5), 32 << 20), 64 << 20)

    stream_specs = [pl.BlockSpec((tb, d), lambda i: (i, 0)) for d in dims]

    def resident(arr):
        # Full-array block, constant index_map -> stays VMEM-resident across steps.
        return pl.BlockSpec(tuple(int(s) for s in arr.shape), lambda i: (0, 0))

    weight_specs = ([resident(w) for w in w1_pieces]
                    + [resident(b1), resident(w2), resident(b2),
                       resident(w3), resident(b3)])

    flops = 2 * B_pad * (in_dim * hidden + hidden * latent + latent * out_dim)
    bytes_streamed = B_pad * (in_dim * cdt.itemsize + out_dim * 4)
    weight_bytes = (sum(int(np.prod(w.shape)) * w.dtype.itemsize for w in w1_pieces)
                    + sum(int(np.prod(a.shape)) * a.dtype.itemsize
                          for a in (b1, w2, b2, w3, b3)))
    cost = pl.CostEstimate(flops=flops, transcendentals=0,
                           bytes_accessed=bytes_streamed + weight_bytes)

    out = pl.pallas_call(
        _make_mlp_kernel(len(streams)),
        out_shape=jax.ShapeDtypeStruct((B_pad, out_dim), jnp.float32),
        grid=grid,
        in_specs=stream_specs + weight_specs,
        out_specs=pl.BlockSpec((tb, out_dim), lambda i: (i, 0)),
        compiler_params=pltpu.CompilerParams(
            dimension_semantics=("parallel",),          # megacore sharding on v7x
            vmem_limit_bytes=int(vmem_limit_bytes)),
        cost_estimate=cost,
    )(*streams, *w1_pieces, b1, w2, b2, w3, b3)

    return out[:B] if B_pad != B else out


def init_params(in_dim, hidden_dim, latent_dim, obs_dim, key):
    """Deterministic synthetic parameters (Linear weight/bias shapes as in torch)."""
    ks = jax.random.split(key, 6)
    scale = 0.05
    w1 = scale * jax.random.normal(ks[0], (in_dim, hidden_dim), jnp.float32)
    b1 = scale * jax.random.normal(ks[1], (1, hidden_dim), jnp.float32)
    w2 = scale * jax.random.normal(ks[2], (hidden_dim, latent_dim), jnp.float32)
    b2 = scale * jax.random.normal(ks[3], (1, latent_dim), jnp.float32)
    w3 = scale * jax.random.normal(ks[4], (latent_dim, obs_dim), jnp.float32)
    b3 = scale * jax.random.normal(ks[5], (1, obs_dim), jnp.float32)
    return (w1, b1, w2, b2, w3, b3)


def _reference(x, obs, step, actions, params, *, quantize=None):
    w1, b1, w2, b2, w3, b3 = params
    net_in = jnp.concatenate(
        [x, obs, step.reshape(x.shape[0], -1), actions.reshape(actions.shape[0], -1)],
        axis=1)
    if quantize is not None:
        net_in = net_in.astype(quantize).astype(jnp.float32)
        w1 = w1.astype(quantize).astype(jnp.float32)
    h = jnp.maximum(net_in @ w1 + b1, 0.0)
    h = jnp.maximum(h @ w2 + b2, 0.0)
    return h @ w3 + b3


if __name__ == "__main__":
    key = jax.random.PRNGKey(0)
    kx, kobs, kstep, kact, kparam = jax.random.split(key, 5)

    # Small, module-consistent shapes.
    B = 2
    obs_dim = 16       # DiffusionModel output dim (and dim of noisy x)
    obs_cond_dim = 16  # conditioning observation dim
    act_dim = 6
    hidden_dim = 32
    latent_dim = 32    # backbone.output_dim

    x = jax.random.normal(kx, (B, obs_dim), jnp.float32)
    obs = jax.random.normal(kobs, (B, obs_cond_dim), jnp.float32)
    step = jax.random.uniform(kstep, (B, 1), jnp.float32)
    actions = jax.random.normal(kact, (B, act_dim), jnp.float32)

    in_dim = obs_dim + obs_cond_dim + 1 + act_dim  # concat([x, obs, step, actions], dim=1)
    params = init_params(in_dim, hidden_dim, latent_dim, obs_dim, kparam)

    # f32 streaming path: exact match to the torch math.
    out_f32 = diffusion_model_forward(x, obs, step, actions, params,
                                      compute_dtype=jnp.float32)
    jax.block_until_ready(out_f32)
    ref = _reference(x, obs, step, actions, params)
    assert out_f32.shape == (B, obs_dim)
    assert jnp.allclose(out_f32, ref, atol=1e-5, rtol=1e-5)

    # Default path (bf16 input streaming, f32 layers 2-3): compare against a
    # reference whose inputs/W1 were identically quantized to bf16.
    out_bf16 = diffusion_model_forward(x, obs, step, actions, params)
    jax.block_until_ready(out_bf16)
    ref_q = _reference(x, obs, step, actions, params, quantize=jnp.bfloat16)
    assert out_bf16.shape == (B, obs_dim)
    assert jnp.allclose(out_bf16, ref_q, atol=1e-3, rtol=2e-2)

    # Multi-tile / partial-last-tile / pad-to-sublane coverage: B=300.
    B2 = 300
    k2 = jax.random.split(key, 4)
    x2 = jax.random.normal(k2[0], (B2, obs_dim), jnp.float32)
    obs2 = jax.random.normal(k2[1], (B2, obs_cond_dim), jnp.float32)
    step2 = jax.random.uniform(k2[2], (B2, 1), jnp.float32)
    act2 = jax.random.normal(k2[3], (B2, act_dim), jnp.float32)
    ref2 = _reference(x2, obs2, step2, act2, params)

    out2 = diffusion_model_forward(x2, obs2, step2, act2, params,
                                   block_b=128, compute_dtype=jnp.float32)
    jax.block_until_ready(out2)
    assert out2.shape == (B2, obs_dim)
    assert jnp.allclose(out2, ref2, atol=1e-5, rtol=1e-5)

    out3 = diffusion_model_forward(x2, obs2, step2, act2, params, block_b=160)
    jax.block_until_ready(out3)
    ref2_q = _reference(x2, obs2, step2, act2, params, quantize=jnp.bfloat16)
    assert out3.shape == (B2, obs_dim)
    assert jnp.allclose(out3, ref2_q, atol=1e-3, rtol=2e-2)

    print("KERNEL_OK")
</pallas_src>

<mosaic_0001>
module attributes {stable_mosaic.version = 11 : i64} {
  func.func @kernel(%arg0: i32, %arg1: memref<8x16xf32, #tpu.memory_space<vmem>>, %arg2: memref<8x16xf32, #tpu.memory_space<vmem>>, %arg3: memref<8x7xf32, #tpu.memory_space<vmem>>, %arg4: memref<16x32xf32, #tpu.memory_space<vmem>>, %arg5: memref<16x32xf32, #tpu.memory_space<vmem>>, %arg6: memref<7x32xf32, #tpu.memory_space<vmem>>, %arg7: memref<1x32xf32, #tpu.memory_space<vmem>>, %arg8: memref<32x32xf32, #tpu.memory_space<vmem>>, %arg9: memref<1x32xf32, #tpu.memory_space<vmem>>, %arg10: memref<32x16xf32, #tpu.memory_space<vmem>>, %arg11: memref<1x16xf32, #tpu.memory_space<vmem>>, %arg12: memref<8x16xf32, #tpu.memory_space<vmem>>) attributes {dimension_semantics = [#tpu.dimension_semantics<parallel>], iteration_bounds = array<i64: 1>, scalar_prefetch = 0 : i64, scratch_operands = 0 : i64, tpu.core_type = #tpu.core_type<tc>, window_params = [{transform_indices = @transform_0, window_bounds = array<i64: 8, 16>}, {transform_indices = @transform_1, window_bounds = array<i64: 8, 16>}, {transform_indices = @transform_2, window_bounds = array<i64: 8, 7>}, {pipeline_mode = #tpu.pipeline_mode<synchronous>, transform_indices = @transform_3, window_bounds = array<i64: 16, 32>}, {pipeline_mode = #tpu.pipeline_mode<synchronous>, transform_indices = @transform_4, window_bounds = array<i64: 16, 32>}, {pipeline_mode = #tpu.pipeline_mode<synchronous>, transform_indices = @transform_5, window_bounds = array<i64: 7, 32>}, {pipeline_mode = #tpu.pipeline_mode<synchronous>, transform_indices = @transform_6, window_bounds = array<i64: 1, 32>}, {pipeline_mode = #tpu.pipeline_mode<synchronous>, transform_indices = @transform_7, window_bounds = array<i64: 32, 32>}, {pipeline_mode = #tpu.pipeline_mode<synchronous>, transform_indices = @transform_8, window_bounds = array<i64: 1, 32>}, {pipeline_mode = #tpu.pipeline_mode<synchronous>, transform_indices = @transform_9, window_bounds = array<i64: 32, 16>}, {pipeline_mode = #tpu.pipeline_mode<synchronous>, transform_indices = @transform_10, window_bounds = array<i64: 1, 16>}, {transform_indices = @transform_11, window_bounds = array<i64: 8, 16>}]} {
    %c0 = arith.constant 0 : index
    %c0_0 = arith.constant 0 : index
    %0 = vector.load %arg1[%c0, %c0_0] : memref<8x16xf32, #tpu.memory_space<vmem>>, vector<8x16xf32>
    %c0_1 = arith.constant 0 : index
    %c0_2 = arith.constant 0 : index
    %1 = vector.load %arg4[%c0_1, %c0_2] : memref<16x32xf32, #tpu.memory_space<vmem>>, vector<16x32xf32>
    %cst = arith.constant dense<0.000000e+00> : vector<8x32xf32>
    %2 = tpu.matmul %0, %1, %cst {dimension_numbers = #tpu.dot_dimension_numbers<[1], [0], [0], [1], [0, 0, 1, 1], [], []>} : vector<8x16xf32>, vector<16x32xf32>, vector<8x32xf32> -> vector<8x32xf32>
    %c0_3 = arith.constant 0 : index
    %c0_4 = arith.constant 0 : index
    %3 = vector.load %arg2[%c0_3, %c0_4] : memref<8x16xf32, #tpu.memory_space<vmem>>, vector<8x16xf32>
    %c0_5 = arith.constant 0 : index
    %c0_6 = arith.constant 0 : index
    %4 = vector.load %arg5[%c0_5, %c0_6] : memref<16x32xf32, #tpu.memory_space<vmem>>, vector<16x32xf32>
    %cst_7 = arith.constant dense<0.000000e+00> : vector<8x32xf32>
    %5 = tpu.matmul %3, %4, %cst_7 {dimension_numbers = #tpu.dot_dimension_numbers<[1], [0], [0], [1], [0, 0, 1, 1], [], []>} : vector<8x16xf32>, vector<16x32xf32>, vector<8x32xf32> -> vector<8x32xf32>
    %6 = arith.addf %2, %5 : vector<8x32xf32>
    %c0_8 = arith.constant 0 : index
    %c0_9 = arith.constant 0 : index
    %7 = vector.load %arg3[%c0_8, %c0_9] : memref<8x7xf32, #tpu.memory_space<vmem>>, vector<8x7xf32>
    %c0_10 = arith.constant 0 : index
    %c0_11 = arith.constant 0 : index
    %8 = vector.load %arg6[%c0_10, %c0_11] : memref<7x32xf32, #tpu.memory_space<vmem>>, vector<7x32xf32>
    %cst_12 = arith.constant dense<0.000000e+00> : vector<8x32xf32>
    %9 = tpu.matmul %7, %8, %cst_12 {dimension_numbers = #tpu.dot_dimension_numbers<[1], [0], [0], [1], [0, 0, 1, 1], [], []>} : vector<8x7xf32>, vector<7x32xf32>, vector<8x32xf32> -> vector<8x32xf32>
    %10 = arith.addf %6, %9 : vector<8x32xf32>
    %c0_13 = arith.constant 0 : index
    %c0_14 = arith.constant 0 : index
    %11 = vector.load %arg7[%c0_13, %c0_14] : memref<1x32xf32, #tpu.memory_space<vmem>>, vector<1x32xf32>
    %12 = vector.broadcast %11 : vector<1x32xf32> to vector<8x32xf32>
    %13 = arith.addf %10, %12 : vector<8x32xf32>
    %cst_15 = arith.constant 0.000000e+00 : f32
    %14 = vector.broadcast %cst_15 : f32 to vector<8x32xf32>
    %15 = arith.maximumf %13, %14 : vector<8x32xf32>
    %c0_16 = arith.constant 0 : index
    %c0_17 = arith.constant 0 : index
    %16 = vector.load %arg8[%c0_16, %c0_17] : memref<32x32xf32, #tpu.memory_space<vmem>>, vector<32x32xf32>
    %cst_18 = arith.constant dense<0.000000e+00> : vector<8x32xf32>
    %17 = tpu.matmul %15, %16, %cst_18 {dimension_numbers = #tpu.dot_dimension_numbers<[1], [0], [0], [1], [0, 0, 1, 1], [], []>} : vector<8x32xf32>, vector<32x32xf32>, vector<8x32xf32> -> vector<8x32xf32>
    %c0_19 = arith.constant 0 : index
    %c0_20 = arith.constant 0 : index
    %18 = vector.load %arg9[%c0_19, %c0_20] : memref<1x32xf32, #tpu.memory_space<vmem>>, vector<1x32xf32>
    %19 = vector.broadcast %18 : vector<1x32xf32> to vector<8x32xf32>
    %20 = arith.addf %17, %19 : vector<8x32xf32>
    %cst_21 = arith.constant 0.000000e+00 : f32
    %21 = vector.broadcast %cst_21 : f32 to vector<8x32xf32>
    %22 = arith.maximumf %20, %21 : vector<8x32xf32>
    %c0_22 = arith.constant 0 : index
    %c0_23 = arith.constant 0 : index
    %23 = vector.load %arg10[%c0_22, %c0_23] : memref<32x16xf32, #tpu.memory_space<vmem>>, vector<32x16xf32>
    %cst_24 = arith.constant dense<0.000000e+00> : vector<8x16xf32>
    %24 = tpu.matmul %22, %23, %cst_24 {dimension_numbers = #tpu.dot_dimension_numbers<[1], [0], [0], [1], [0, 0, 1, 1], [], []>} : vector<8x32xf32>, vector<32x16xf32>, vector<8x16xf32> -> vector<8x16xf32>
    %c0_25 = arith.constant 0 : index
    %c0_26 = arith.constant 0 : index
    %25 = vector.load %arg11[%c0_25, %c0_26] : memref<1x16xf32, #tpu.memory_space<vmem>>, vector<1x16xf32>
    %26 = vector.broadcast %25 : vector<1x16xf32> to vector<8x16xf32>
    %27 = arith.addf %24, %26 : vector<8x16xf32>
    %c0_27 = arith.constant 0 : index
    %c0_28 = arith.constant 0 : index
    %28 = vector.load %arg12[%c0_27, %c0_28] : memref<8x16xf32, #tpu.memory_space<vmem>>, vector<8x16xf32>
    tpu.vector_store %arg12[%c0_27, %c0_28], %27 {strides = array<i32>} : memref<8x16xf32, #tpu.memory_space<vmem>>, vector<8x16xf32>,
    return
  }
  func.func @transform_0(%arg0: i32) -> (i32, i32) {
    %c0_i32 = arith.constant 0 : i32
    %c0_i32_0 = arith.constant 0 : i32
    return %arg0, %c0_i32 : i32, i32
  }
  func.func @transform_1(%arg0: i32) -> (i32, i32) {
    %c0_i32 = arith.constant 0 : i32
    %c0_i32_0 = arith.constant 0 : i32
    return %arg0, %c0_i32 : i32, i32
  }
  func.func @transform_2(%arg0: i32) -> (i32, i32) {
    %c0_i32 = arith.constant 0 : i32
    %c0_i32_0 = arith.constant 0 : i32
    return %arg0, %c0_i32 : i32, i32
  }
  func.func @transform_3(%arg0: i32) -> (i32, i32) {
    %c0_i32 = arith.constant 0 : i32
    %c0_i32_0 = arith.constant 0 : i32
    %c0_i32_1 = arith.constant 0 : i32
    return %c0_i32, %c0_i32_0 : i32, i32
  }
  func.func @transform_4(%arg0: i32) -> (i32, i32) {
    %c0_i32 = arith.constant 0 : i32
    %c0_i32_0 = arith.constant 0 : i32
    %c0_i32_1 = arith.constant 0 : i32
    return %c0_i32, %c0_i32_0 : i32, i32
  }
  func.func @transform_5(%arg0: i32) -> (i32, i32) {
    %c0_i32 = arith.constant 0 : i32
    %c0_i32_0 = arith.constant 0 : i32
    %c0_i32_1 = arith.constant 0 : i32
    return %c0_i32, %c0_i32_0 : i32, i32
  }
  func.func @transform_6(%arg0: i32) -> (i32, i32) {
    %c0_i32 = arith.constant 0 : i32
    %c0_i32_0 = arith.constant 0 : i32
    %c0_i32_1 = arith.constant 0 : i32
    return %c0_i32, %c0_i32_0 : i32, i32
  }
  func.func @transform_7(%arg0: i32) -> (i32, i32) {
    %c0_i32 = arith.constant 0 : i32
    %c0_i32_0 = arith.constant 0 : i32
    %c0_i32_1 = arith.constant 0 : i32
    return %c0_i32, %c0_i32_0 : i32, i32
  }
  func.func @transform_8(%arg0: i32) -> (i32, i32) {
    %c0_i32 = arith.constant 0 : i32
    %c0_i32_0 = arith.constant 0 : i32
    %c0_i32_1 = arith.constant 0 : i32
    return %c0_i32, %c0_i32_0 : i32, i32
  }
  func.func @transform_9(%arg0: i32) -> (i32, i32) {
    %c0_i32 = arith.constant 0 : i32
    %c0_i32_0 = arith.constant 0 : i32
    %c0_i32_1 = arith.constant 0 : i32
    return %c0_i32, %c0_i32_0 : i32, i32
  }
  func.func @transform_10(%arg0: i32) -> (i32, i32) {
    %c0_i32 = arith.constant 0 : i32
    %c0_i32_0 = arith.constant 0 : i32
    %c0_i32_1 = arith.constant 0 : i32
    return %c0_i32, %c0_i32_0 : i32, i32
  }
  func.func @transform_11(%arg0: i32) -> (i32, i32) {
    %c0_i32 = arith.constant 0 : i32
    %c0_i32_0 = arith.constant 0 : i32
    return %arg0, %c0_i32 : i32, i32
  }
}

</mosaic_0001>

<llo_original>
// kernel: tpu_custom_call.1
$region0: #{tpu_custom_call.1}
  #allocation0 [shape = 'u32[]', space=smem, size = 0x4, offset = 0x4, fixed_abs, tag = 'smem constant byte address 0x4 - core index']
  #allocation1 [shape = 'u32[144,128]{1,0:T(1,128)}', space=vmem, size = 0x12000, scoped, tag = 'internal scratch']
  %s0 = inlined_call_operand.hbm [shape: f32[8,16], index: 0, kind: input, shape index: {}]
  %s1 = inlined_call_operand.hbm [shape: f32[8,16], index: 1, kind: input, shape index: {}]
  %s2 = inlined_call_operand.hbm [shape: f32[8,7], index: 2, kind: input, shape index: {}]
  %s3 = inlined_call_operand.vmem [shape: f32[16,32], index: 3, kind: input, shape index: {}]
  %s4 = inlined_call_operand.hbm [shape: f32[16,32], index: 4, kind: input, shape index: {}]
  %s5 = inlined_call_operand.hbm [shape: f32[7,32], index: 5, kind: input, shape index: {}]
  %s6 = inlined_call_operand.hbm [shape: f32[1,32], index: 6, kind: input, shape index: {}]
  %s7 = inlined_call_operand.vmem [shape: f32[32,32], index: 7, kind: input, shape index: {}]
  %s8 = inlined_call_operand.hbm [shape: f32[1,32], index: 8, kind: input, shape index: {}]
  %s9 = inlined_call_operand.vmem [shape: f32[32,16], index: 9, kind: input, shape index: {}]
  %s10 = inlined_call_operand.vmem [shape: f32[1,16], index: 10, kind: input, shape index: {}]
  %s11 = inlined_call_operand.hbm [shape: f32[8,16], index: 11, kind: output, shape index: {}]
  %s12 = sld [smem:[#allocation0]]
  $region82: #{tpu_custom_call.1} parent=0
    _
  %s14 = ssub.s32 1, %s12
  %s15 = scalar_select 0, %s14, %s12
  $region1: #{tpu_custom_call.1} parent=0
    #allocation2 [shape = 'u8[4096]{0}', space=vmem, size = 0x1000, scoped, tag = 'input window, operand 0, single buffered']
    #allocation3 [shape = 's32[1]{0}', space=sflag, size = 0x4, scoped, tag = 'scoped memory for tpu_custom_call.1']
    #allocation4 [shape = 's32[1]{0}', space=sflag, size = 0x4, scoped, tag = 'scoped memory for tpu_custom_call.1']
    #allocation5 [shape = 'u8[4096]{0}', space=vmem, size = 0x1000, scoped, tag = 'input window, operand 1, single buffered']
    #allocation6 [shape = 's32[1]{0}', space=sflag, size = 0x4, scoped, tag = 'scoped memory for tpu_custom_call.1']
    #allocation7 [shape = 'u8[4096]{0}', space=vmem, size = 0x1000, scoped, tag = 'input window, operand 2, single buffered']
    #allocation8 [shape = 'u8[8192]{0}', space=vmem, size = 0x2000, scoped, tag = 'input window, operand 4, single buffered']
    #allocation9 [shape = 's32[1]{0}', space=sflag, size = 0x4, scoped, tag = 'scoped memory for tpu_custom_call.1']
    #allocation10 [shape = 'u8[4096]{0}', space=vmem, size = 0x1000, scoped, tag = 'input window, operand 5, single buffered']
    #allocation11 [shape = 'u8[512]{0}', space=vmem, size = 0x400, scoped, tag = 'input window, operand 6, single buffered']
    #allocation12 [shape = 's32[1]{0}', space=sflag, size = 0x4, scoped, tag = 'scoped memory for tpu_custom_call.1']
    #allocation13 [shape = 'u8[512]{0}', space=vmem, size = 0x400, scoped, tag = 'input window, operand 8, single buffered']
    #allocation14 [shape = 'u8[4096]{0}', space=vmem, size = 0x1000, scoped, tag = 'output window, operand 0, single buffered']
    %16 = vsyncpa [#allocation3], 0
    %17 = vsyncpa [#allocation6], 0
    %18 = vsyncpa [#allocation9], 0
    %19 = vsyncpa [#allocation12], 0
    %20 = vsyncpa [#allocation4], 0
    // Predicated region
    $region2: #{tpu_custom_call.1} parent=1 // pred_check
      _
    $region3: #{tpu_custom_call.1} parent=1 // pred_check_branch
      %22 = sbr.rel (0) target = $region5
    $region4: #{tpu_custom_call.1} parent=1 // pred_region
      %s24 = ssub.s32 128, 128
      %25 = vsyncadd [#allocation3], %s24
      %s27 = sshll.u32 [#allocation2], 4
      %s28 = int_to_ptr.vmem [resolvable:$true] %s27
      %30 = dma.hbm_to_vmem [thread:$0]  %s0, 128, %s28, [#allocation3]
    $region5: #{tpu_custom_call.1} parent=1 // pred_fallthru
      _
    // Predicated region
    $region6: #{tpu_custom_call.1} parent=1 // pred_check
      _
    $region7: #{tpu_custom_call.1} parent=1 // pred_check_branch
      %32 = sbr.rel (0) target = $region9
    $region8: #{tpu_custom_call.1} parent=1 // pred_region
      %s34 = ssub.s32 128, 128
      %35 = vsyncadd [#allocation6], %s34
      %s37 = sshll.u32 [#allocation5], 4
      %s38 = int_to_ptr.vmem [resolvable:$true] %s37
      %40 = dma.hbm_to_vmem [thread:$0]  %s1, 128, %s38, [#allocation6]
    $region9: #{tpu_custom_call.1} parent=1 // pred_fallthru
      _
    // Predicated region
    $region10: #{tpu_custom_call.1} parent=1 // pred_check
      _
    $region11: #{tpu_custom_call.1} parent=1 // pred_check_branch
      %42 = sbr.rel (0) target = $region13
    $region12: #{tpu_custom_call.1} parent=1 // pred_region
      %s44 = ssub.s32 128, 128
      %45 = vsyncadd [#allocation6], %s44
      %s47 = sshll.u32 [#allocation7], 4
      %s48 = int_to_ptr.vmem [resolvable:$true] %s47
      %50 = dma.hbm_to_vmem [thread:$0]  %s2, 128, %s48, [#allocation6]
    $region13: #{tpu_custom_call.1} parent=1 // pred_fallthru
      _
    // Predicated region
    $region14: #{tpu_custom_call.1} parent=1 // pred_check
      _
    $region15: #{tpu_custom_call.1} parent=1 // pred_check_branch
      %52 = sbr.rel (0) target = $region17
    $region16: #{tpu_custom_call.1} parent=1 // pred_region
      _
    $region17: #{tpu_custom_call.1} parent=1 // pred_fallthru
      _
    // Predicated region
    $region18: #{tpu_custom_call.1} parent=1 // pred_check
      _
    $region19: #{tpu_custom_call.1} parent=1 // pred_check_branch
      %54 = sbr.rel (0) target = $region21
    $region20: #{tpu_custom_call.1} parent=1 // pred_region
      %s56 = ssub.s32 256, 256
      %57 = vsyncadd [#allocation9], %s56
      %s58 = sshll.u32 [#allocation8], 4
      %s59 = int_to_ptr.vmem [resolvable:$true] %s58
      %64 = dma.hbm_to_vmem [thread:$0]  %s4, 256, %s59, [#allocation9], 128, 128, 8
    $region21: #{tpu_custom_call.1} parent=1 // pred_fallthru
      _
    // Predicated region
    $region22: #{tpu_custom_call.1} parent=1 // pred_check
      _
    $region23: #{tpu_custom_call.1} parent=1 // pred_check_branch
      %66 = sbr.rel (0) target = $region25
    $region24: #{tpu_custom_call.1} parent=1 // pred_region
      %s68 = ssub.s32 128, 128
      %69 = vsyncadd [#allocation9], %s68
      %s71 = sshll.u32 [#allocation10], 4
      %s72 = int_to_ptr.vmem [resolvable:$true] %s71
      %74 = dma.hbm_to_vmem [thread:$0]  %s5, 128, %s72, [#allocation9]
    $region25: #{tpu_custom_call.1} parent=1 // pred_fallthru
      _
    // Predicated region
    $region26: #{tpu_custom_call.1} parent=1 // pred_check
      _
    $region27: #{tpu_custom_call.1} parent=1 // pred_check_branch
      %76 = sbr.rel (0) target = $region29
    $region28: #{tpu_custom_call.1} parent=1 // pred_region
      %s78 = ssub.s32 16, 16
      %79 = vsyncadd [#allocation12], %s78
      %s81 = sshll.u32 [#allocation11], 4
      %s82 = int_to_ptr.vmem [resolvable:$true] %s81
      %84 = dma.hbm_to_vmem [thread:$0]  %s6, 16, %s82, [#allocation12]
    $region29: #{tpu_custom_call.1} parent=1 // pred_fallthru
      _
    // Predicated region
    $region30: #{tpu_custom_call.1} parent=1 // pred_check
      _
    $region31: #{tpu_custom_call.1} parent=1 // pred_check_branch
      %86 = sbr.rel (0) target = $region33
    $region32: #{tpu_custom_call.1} parent=1 // pred_region
      _
    $region33: #{tpu_custom_call.1} parent=1 // pred_fallthru
      _
    // Predicated region
    $region34: #{tpu_custom_call.1} parent=1 // pred_check
      _
    $region35: #{tpu_custom_call.1} parent=1 // pred_check_branch
      %88 = sbr.rel (0) target = $region37
    $region36: #{tpu_custom_call.1} parent=1 // pred_region
      %s90 = ssub.s32 16, 16
      %91 = vsyncadd [#allocation12], %s90
      %s93 = sshll.u32 [#allocation13], 4
      %s94 = int_to_ptr.vmem [resolvable:$true] %s93
      %96 = dma.hbm_to_vmem [thread:$0]  %s8, 16, %s94, [#allocation12]
    $region37: #{tpu_custom_call.1} parent=1 // pred_fallthru
      _
    // Predicated region
    $region38: #{tpu_custom_call.1} parent=1 // pred_check
      _
    $region39: #{tpu_custom_call.1} parent=1 // pred_check_branch
      %98 = sbr.rel (0) target = $region41
    $region40: #{tpu_custom_call.1} parent=1 // pred_region
      _
    $region41: #{tpu_custom_call.1} parent=1 // pred_fallthru
      _
    // Predicated region
    $region42: #{tpu_custom_call.1} parent=1 // pred_check
      _
    $region43: #{tpu_custom_call.1} parent=1 // pred_check_branch
      %100 = sbr.rel (0) target = $region45
    $region44: #{tpu_custom_call.1} parent=1 // pred_region
      _
    $region45: #{tpu_custom_call.1} parent=1 // pred_fallthru
      _
    // Predicated region
    $region46: #{tpu_custom_call.1} parent=1 // pred_check
      _
    $region47: #{tpu_custom_call.1} parent=1 // pred_check_branch
      %102 = sbr.rel (0) target = $region49
    $region48: #{tpu_custom_call.1} parent=1 // pred_region
      %103 = dma.done [#allocation3], 128
    $region49: #{tpu_custom_call.1} parent=1 // pred_fallthru
      _
    // Predicated region
    $region50: #{tpu_custom_call.1} parent=1 // pred_check
      _
    $region51: #{tpu_custom_call.1} parent=1 // pred_check_branch
      %105 = sbr.rel (0) target = $region53
    $region52: #{tpu_custom_call.1} parent=1 // pred_region
      %106 = dma.done [#allocation6], 128
    $region53: #{tpu_custom_call.1} parent=1 // pred_fallthru
      _
    // Predicated region
    $region54: #{tpu_custom_call.1} parent=1 // pred_check
      _
    $region55: #{tpu_custom_call.1} parent=1 // pred_check_branch
      %108 = sbr.rel (0) target = $region57
    $region56: #{tpu_custom_call.1} parent=1 // pred_region
      %109 = dma.done [#allocation6], 128
    $region57: #{tpu_custom_call.1} parent=1 // pred_fallthru
      _
    // Predicated region
    $region58: #{tpu_custom_call.1} parent=1 // pred_check
      _
    $region59: #{tpu_custom_call.1} parent=1 // pred_check_branch
      %111 = sbr.rel (0) target = $region61
    $region60: #{tpu_custom_call.1} parent=1 // pred_region
      %112 = dma.done [#allocation9], 256
    $region61: #{tpu_custom_call.1} parent=1 // pred_fallthru
      _
    // Predicated region
    $region62: #{tpu_custom_call.1} parent=1 // pred_check
      _
    $region63: #{tpu_custom_call.1} parent=1 // pred_check_branch
      %114 = sbr.rel (0) target = $region65
    $region64: #{tpu_custom_call.1} parent=1 // pred_region
      %115 = dma.done [#allocation9], 128
    $region65: #{tpu_custom_call.1} parent=1 // pred_fallthru
      _
    // Predicated region
    $region66: #{tpu_custom_call.1} parent=1 // pred_check
      _
    $region67: #{tpu_custom_call.1} parent=1 // pred_check_branch
      %117 = sbr.rel (0) target = $region69
    $region68: #{tpu_custom_call.1} parent=1 // pred_region
      %118 = dma.done [#allocation12], 16
    $region69: #{tpu_custom_call.1} parent=1 // pred_fallthru
      _
    // Predicated region
    $region70: #{tpu_custom_call.1} parent=1 // pred_check
      _
    $region71: #{tpu_custom_call.1} parent=1 // pred_check_branch
      %120 = sbr.rel (0) target = $region73
    $region72: #{tpu_custom_call.1} parent=1 // pred_region
      %121 = dma.done [#allocation12], 16
    $region73: #{tpu_custom_call.1} parent=1 // pred_fallthru
      _
    %v122 = vld [vmem:[#allocation2] sm:$0xff]
    %v123 = vld [vmem:[%s3] sm:$0xff]
    %v124 = vld [vmem:[%s3 + $0x8] sm:$0xff]
    %v125 = vld [vmem:[#allocation5] sm:$0xff]
    %v126 = vld [vmem:[#allocation8] sm:$0xff]
    %v127 = vld [vmem:[#allocation8 + $0x8] sm:$0xff]
    %vm128 = vcmask 130048
    %v130 = vsel %vm128, %v125, 0
    %132 = vmatprep.subr.mxu0 0.0
    %133 = vmatpush1.msra.mxu0 0.0
    %134 = vmatprep.subr.mxu0 0.0
    %135 = vmatpush1.msra.mxu0 0.0
    %136 = vmatprep.subr.mxu0 0.0
    %137 = vmatpush1.msra.mxu0 0.0
    %138 = vmatprep.subr.mxu0 0.0
    %139 = vmatpush1.msra.mxu0 0.0
    %140 = vmatprep.subr.mxu0 0.0
    %141 = vmatpush1.msra.mxu0 0.0
    %142 = vmatprep.subr.mxu0 0.0
    %143 = vmatpush1.msra.mxu0 0.0
    %144 = vmatprep.subr.mxu0 0.0
    %145 = vmatpush1.msra.mxu0 0.0
    %146 = vmatprep.subr.mxu0 0.0
    %147 = vmatpush1.msra.mxu0 0.0
    %148 = vmatprep.subr.mxu0 0.0
    %149 = vmatpush1.msra.mxu0 0.0
    %150 = vmatprep.subr.mxu0 0.0
    %151 = vmatpush1.msra.mxu0 0.0
    %152 = vmatprep.subr.mxu0 0.0
    %153 = vmatpush1.msra.mxu0 0.0
    %154 = vmatprep.subr.mxu0 0.0
    %155 = vmatpush1.msra.mxu0 0.0
    %156 = vmatprep.subr.mxu0 0.0
    %157 = vmatpush1.msra.mxu0 0.0
    %158 = vmatprep.subr.mxu0 0.0
    %159 = vmatpush1.msra.mxu0 0.0
    %160 = vmatprep.subr.mxu0 0.0
    %161 = vmatpush1.msra.mxu0 %v127
    %162 = vmatprep.subr.mxu0 0.0
    %163 = vmatpush1.msra.mxu0 %v126
    %164 = vmatprep.subr.mxu0 0.0
    %165 = vmatpush2.msra.mxu0 0.0
    %166 = vmatprep.subr.mxu0 0.0
    %167 = vmatpush2.msra.mxu0 0.0
    %168 = vmatprep.subr.mxu0 0.0
    %169 = vmatpush2.msra.mxu0 0.0
    %170 = vmatprep.subr.mxu0 0.0
    %171 = vmatpush2.msra.mxu0 0.0
    %172 = vmatprep.subr.mxu0 0.0
    %173 = vmatpush2.msra.mxu0 0.0
    %174 = vmatprep.subr.mxu0 0.0
    %175 = vmatpush2.msra.mxu0 0.0
    %176 = vmatprep.subr.mxu0 0.0
    %177 = vmatpush2.msra.mxu0 0.0
    %178 = vmatprep.subr.mxu0 0.0
    %179 = vmatpush2.msra.mxu0 0.0
    %180 = vmatprep.subr.mxu0 0.0
    %181 = vmatpush2.msra.mxu0 0.0
    %182 = vmatprep.subr.mxu0 0.0
    %183 = vmatpush2.msra.mxu0 0.0
    %184 = vmatprep.subr.mxu0 0.0
    %185 = vmatpush2.msra.mxu0 0.0
    %186 = vmatprep.subr.mxu0 0.0
    %187 = vmatpush2.msra.mxu0 0.0
    %188 = vmatprep.subr.mxu0 0.0
    %189 = vmatpush2.msra.mxu0 0.0
    %190 = vmatprep.subr.mxu0 0.0
    %191 = vmatpush2.msra.mxu0 0.0
    %192 = vmatprep.subr.mxu0 0.0
    %193 = vmatpush2.msra.mxu0 0.0
    %194 = vmatprep.subr.mxu0 0.0
    %195 = vmatpush2.msra.mxu0 0.0
    %196 = vmatprep.mubr.f32.mxu0 0.0
    %197 = vmatmul.mubr.f32.gmra.mxu0 %v130
    %v198 = vpop.f32.mrf.mxu0
    %v199 = vadd.f32 0.0, %v198
    %v200 = vpop.f32.mrf.mxu0
    %201 = vdwg.mxu0
    %v203 = vsel %vm128, %v122, 0
    %205 = vmatprep.subr.mxu0 0.0
    %206 = vmatpush1.msra.mxu0 0.0
    %207 = vmatprep.subr.mxu0 0.0
    %208 = vmatpush1.msra.mxu0 0.0
    %209 = vmatprep.subr.mxu0 0.0
    %210 = vmatpush1.msra.mxu0 0.0
    %211 = vmatprep.subr.mxu0 0.0
    %212 = vmatpush1.msra.mxu0 0.0
    %213 = vmatprep.subr.mxu0 0.0
    %214 = vmatpush1.msra.mxu0 0.0
    %215 = vmatprep.subr.mxu0 0.0
    %216 = vmatpush1.msra.mxu0 0.0
    %217 = vmatprep.subr.mxu0 0.0
    %218 = vmatpush1.msra.mxu0 0.0
    %219 = vmatprep.subr.mxu0 0.0
    %220 = vmatpush1.msra.mxu0 0.0
    %221 = vmatprep.subr.mxu0 0.0
    %222 = vmatpush1.msra.mxu0 0.0
    %223 = vmatprep.subr.mxu0 0.0
    %224 = vmatpush1.msra.mxu0 0.0
    %225 = vmatprep.subr.mxu0 0.0
    %226 = vmatpush1.msra.mxu0 0.0
    %227 = vmatprep.subr.mxu0 0.0
    %228 = vmatpush1.msra.mxu0 0.0
    %229 = vmatprep.subr.mxu0 0.0
    %230 = vmatpush1.msra.mxu0 0.0
    %231 = vmatprep.subr.mxu0 0.0
    %232 = vmatpush1.msra.mxu0 0.0
    %233 = vmatprep.subr.mxu0 0.0
    %234 = vmatpush1.msra.mxu0 %v124
    %235 = vmatprep.subr.mxu0 0.0
    %236 = vmatpush1.msra.mxu0 %v123
    %237 = vmatprep.subr.mxu0 0.0
    %238 = vmatpush2.msra.mxu0 0.0
    %239 = vmatprep.subr.mxu0 0.0
    %240 = vmatpush2.msra.mxu0 0.0
    %241 = vmatprep.subr.mxu0 0.0
    %242 = vmatpush2.msra.mxu0 0.0
    %243 = vmatprep.subr.mxu0 0.0
    %244 = vmatpush2.msra.mxu0 0.0
    %245 = vmatprep.subr.mxu0 0.0
    %246 = vmatpush2.msra.mxu0 0.0
    %247 = vmatprep.subr.mxu0 0.0
    %248 = vmatpush2.msra.mxu0 0.0
    %249 = vmatprep.subr.mxu0 0.0
    %250 = vmatpush2.msra.mxu0 0.0
    %251 = vmatprep.subr.mxu0 0.0
    %252 = vmatpush2.msra.mxu0 0.0
    %253 = vmatprep.subr.mxu0 0.0
    %254 = vmatpush2.msra.mxu0 0.0
    %255 = vmatprep.subr.mxu0 0.0
    %256 = vmatpush2.msra.mxu0 0.0
    %257 = vmatprep.subr.mxu0 0.0
    %258 = vmatpush2.msra.mxu0 0.0
    %259 = vmatprep.subr.mxu0 0.0
    %260 = vmatpush2.msra.mxu0 0.0
    %261 = vmatprep.subr.mxu0 0.0
    %262 = vmatpush2.msra.mxu0 0.0
    %263 = vmatprep.subr.mxu0 0.0
    %264 = vmatpush2.msra.mxu0 0.0
    %265 = vmatprep.subr.mxu0 0.0
    %266 = vmatpush2.msra.mxu0 0.0
    %267 = vmatprep.subr.mxu0 0.0
    %268 = vmatpush2.msra.mxu0 0.0
    %269 = vmatprep.mubr.f32.mxu0 0.0
    %270 = vmatmul.mubr.f32.gmra.mxu0 %v203
    %v271 = vpop.f32.mrf.mxu0
    %v272 = vadd.f32 %v199, %v271
    %v273 = vpop.f32.mrf.mxu0
    %274 = vdwg.mxu0
    %v275 = vld [vmem:[#allocation7] sm:$0xff]
    %v276 = vld [vmem:[#allocation10] sm:$0x7f]
    %vm277 = vcmask 56320
    %v279 = vsel %vm277, %v275, 0
    %vm281 = vcmask 1046528
    %v283 = vsel %vm281, %v276, 0
    %285 = vmatprep.subr.mxu0 0.0
    %286 = vmatpush1.msra.mxu0 0.0
    %287 = vmatprep.subr.mxu0 0.0
    %288 = vmatpush1.msra.mxu0 0.0
    %289 = vmatprep.subr.mxu0 0.0
    %290 = vmatpush1.msra.mxu0 0.0
    %291 = vmatprep.subr.mxu0 0.0
    %292 = vmatpush1.msra.mxu0 0.0
    %293 = vmatprep.subr.mxu0 0.0
    %294 = vmatpush1.msra.mxu0 0.0
    %295 = vmatprep.subr.mxu0 0.0
    %296 = vmatpush1.msra.mxu0 0.0
    %297 = vmatprep.subr.mxu0 0.0
    %298 = vmatpush1.msra.mxu0 0.0
    %299 = vmatprep.subr.mxu0 0.0
    %300 = vmatpush1.msra.mxu0 0.0
    %301 = vmatprep.subr.mxu0 0.0
    %302 = vmatpush1.msra.mxu0 0.0
    %303 = vmatprep.subr.mxu0 0.0
    %304 = vmatpush1.msra.mxu0 0.0
    %305 = vmatprep.subr.mxu0 0.0
    %306 = vmatpush1.msra.mxu0 0.0
    %307 = vmatprep.subr.mxu0 0.0
    %308 = vmatpush1.msra.mxu0 0.0
    %309 = vmatprep.subr.mxu0 0.0
    %310 = vmatpush1.msra.mxu0 0.0
    %311 = vmatprep.subr.mxu0 0.0
    %312 = vmatpush1.msra.mxu0 0.0
    %313 = vmatprep.subr.mxu0 0.0
    %314 = vmatpush1.msra.mxu0 0.0
    %315 = vmatprep.subr.mxu0 0.0
    %316 = vmatpush1.msra.mxu0 %v283
    %317 = vmatprep.subr.mxu0 0.0
    %318 = vmatpush2.msra.mxu0 0.0
    %319 = vmatprep.subr.mxu0 0.0
    %320 = vmatpush2.msra.mxu0 0.0
    %321 = vmatprep.subr.mxu0 0.0
    %322 = vmatpush2.msra.mxu0 0.0
    %323 = vmatprep.subr.mxu0 0.0
    %324 = vmatpush2.msra.mxu0 0.0
    %325 = vmatprep.subr.mxu0 0.0
    %326 = vmatpush2.msra.mxu0 0.0
    %327 = vmatprep.subr.mxu0 0.0
    %328 = vmatpush2.msra.mxu0 0.0
    %329 = vmatprep.subr.mxu0 0.0
    %330 = vmatpush2.msra.mxu0 0.0
    %331 = vmatprep.subr.mxu0 0.0
    %332 = vmatpush2.msra.mxu0 0.0
    %333 = vmatprep.subr.mxu0 0.0
    %334 = vmatpush2.msra.mxu0 0.0
    %335 = vmatprep.subr.mxu0 0.0
    %336 = vmatpush2.msra.mxu0 0.0
    %337 = vmatprep.subr.mxu0 0.0
    %338 = vmatpush2.msra.mxu0 0.0
    %339 = vmatprep.subr.mxu0 0.0
    %340 = vmatpush2.msra.mxu0 0.0
    %341 = vmatprep.subr.mxu0 0.0
    %342 = vmatpush2.msra.mxu0 0.0
    %343 = vmatprep.subr.mxu0 0.0
    %344 = vmatpush2.msra.mxu0 0.0
    %345 = vmatprep.subr.mxu0 0.0
    %346 = vmatpush2.msra.mxu0 0.0
    %347 = vmatprep.subr.mxu0 0.0
    %348 = vmatpush2.msra.mxu0 0.0
    %349 = vmatprep.mubr.f32.mxu0 0.0
    %350 = vmatmul.mubr.f32.gmra.mxu0 %v279
    %v351 = vpop.f32.mrf.mxu0
    %v352 = vadd.f32 0.0, %v351
    %v353 = vpop.f32.mrf.mxu0
    %354 = vdwg.mxu0
    %v355 = vadd.f32 %v272, %v352
    %v356 = vld [vmem:[#allocation11] sm:$0x1]
    %v358 = vlaneseq
    %v359 = vshrl.u32 %v358, 7
    %v360 = vsub.s32 0, %v359
    %v361 = vrot.slane %v356, %v360
    %v363 = vadd.f32 %v355, %v361
    %v364 = vmax.f32 %v363, 0.0
    %v365 = vld [vmem:[%s7] sm:$0xff]
    %v366 = vld [vmem:[%s7 + $0x8] sm:$0xff]
    %v367 = vld [vmem:[%s7 + $0x10] sm:$0xff]
    %v368 = vld [vmem:[%s7 + $0x18] sm:$0xff]
    %v369 = vld [vmem:[#allocation13] sm:$0x1]
    %v371 = vlaneseq
    %v372 = vshrl.u32 %v371, 7
    %v373 = vsub.s32 0, %v372
    %v374 = vrot.slane %v369, %v373
    %vm376 = vcmask 261120
    %v378 = vsel %vm376, %v364, 0
    %380 = vmatprep.subr.mxu0 0.0
    %381 = vmatpush1.msra.mxu0 0.0
    %382 = vmatprep.subr.mxu0 0.0
    %383 = vmatpush1.msra.mxu0 0.0
    %384 = vmatprep.subr.mxu0 0.0
    %385 = vmatpush1.msra.mxu0 0.0
    %386 = vmatprep.subr.mxu0 0.0
    %387 = vmatpush1.msra.mxu0 0.0
    %388 = vmatprep.subr.mxu0 0.0
    %389 = vmatpush1.msra.mxu0 0.0
    %390 = vmatprep.subr.mxu0 0.0
    %391 = vmatpush1.msra.mxu0 0.0
    %392 = vmatprep.subr.mxu0 0.0
    %393 = vmatpush1.msra.mxu0 0.0
    %394 = vmatprep.subr.mxu0 0.0
    %395 = vmatpush1.msra.mxu0 0.0
    %396 = vmatprep.subr.mxu0 0.0
    %397 = vmatpush1.msra.mxu0 0.0
    %398 = vmatprep.subr.mxu0 0.0
    %399 = vmatpush1.msra.mxu0 0.0
    %400 = vmatprep.subr.mxu0 0.0
    %401 = vmatpush1.msra.mxu0 0.0
    %402 = vmatprep.subr.mxu0 0.0
    %403 = vmatpush1.msra.mxu0 0.0
    %404 = vmatprep.subr.mxu0 0.0
    %405 = vmatpush1.msra.mxu0 %v368
    %406 = vmatprep.subr.mxu0 0.0
    %407 = vmatpush1.msra.mxu0 %v367
    %408 = vmatprep.subr.mxu0 0.0
    %409 = vmatpush1.msra.mxu0 %v366
    %410 = vmatprep.subr.mxu0 0.0
    %411 = vmatpush1.msra.mxu0 %v365
    %412 = vmatprep.subr.mxu0 0.0
    %413 = vmatpush2.msra.mxu0 0.0
    %414 = vmatprep.subr.mxu0 0.0
    %415 = vmatpush2.msra.mxu0 0.0
    %416 = vmatprep.subr.mxu0 0.0
    %417 = vmatpush2.msra.mxu0 0.0
    %418 = vmatprep.subr.mxu0 0.0
    %419 = vmatpush2.msra.mxu0 0.0
    %420 = vmatprep.subr.mxu0 0.0
    %421 = vmatpush2.msra.mxu0 0.0
    %422 = vmatprep.subr.mxu0 0.0
    %423 = vmatpush2.msra.mxu0 0.0
    %424 = vmatprep.subr.mxu0 0.0
    %425 = vmatpush2.msra.mxu0 0.0
    %426 = vmatprep.subr.mxu0 0.0
    %427 = vmatpush2.msra.mxu0 0.0
    %428 = vmatprep.subr.mxu0 0.0
    %429 = vmatpush2.msra.mxu0 0.0
    %430 = vmatprep.subr.mxu0 0.0
    %431 = vmatpush2.msra.mxu0 0.0
    %432 = vmatprep.subr.mxu0 0.0
    %433 = vmatpush2.msra.mxu0 0.0
    %434 = vmatprep.subr.mxu0 0.0
    %435 = vmatpush2.msra.mxu0 0.0
    %436 = vmatprep.subr.mxu0 0.0
    %437 = vmatpush2.msra.mxu0 0.0
    %438 = vmatprep.subr.mxu0 0.0
    %439 = vmatpush2.msra.mxu0 0.0
    %440 = vmatprep.subr.mxu0 0.0
    %441 = vmatpush2.msra.mxu0 0.0
    %442 = vmatprep.subr.mxu0 0.0
    %443 = vmatpush2.msra.mxu0 0.0
    %444 = vmatprep.mubr.f32.mxu0 0.0
    %445 = vmatmul.mubr.f32.gmra.mxu0 %v378
    %v446 = vpop.f32.mrf.mxu0
    %v447 = vadd.f32 %v374, %v446
    %v448 = vpop.f32.mrf.mxu0
    %449 = vdwg.mxu0
    %v450 = vmax.f32 %v447, 0.0
    %v451 = vld [vmem:[%s9] sm:$0xff]
    %v452 = vld [vmem:[%s9 + $0x8] sm:$0xff]
    %v453 = vld [vmem:[%s9 + $0x10] sm:$0xff]
    %v454 = vld [vmem:[%s9 + $0x18] sm:$0xff]
    %v455 = vld [vmem:[%s10] sm:$0x1]
    %v457 = vlaneseq
    %v458 = vshrl.u32 %v457, 7
    %v459 = vsub.s32 0, %v458
    %v460 = vrot.slane %v455, %v459
    %v463 = vsel %vm376, %v450, 0
    %465 = vmatprep.subr.mxu0 0.0
    %466 = vmatpush1.msra.mxu0 0.0
    %467 = vmatprep.subr.mxu0 0.0
    %468 = vmatpush1.msra.mxu0 0.0
    %469 = vmatprep.subr.mxu0 0.0
    %470 = vmatpush1.msra.mxu0 0.0
    %471 = vmatprep.subr.mxu0 0.0
    %472 = vmatpush1.msra.mxu0 0.0
    %473 = vmatprep.subr.mxu0 0.0
    %474 = vmatpush1.msra.mxu0 0.0
    %475 = vmatprep.subr.mxu0 0.0
    %476 = vmatpush1.msra.mxu0 0.0
    %477 = vmatprep.subr.mxu0 0.0
    %478 = vmatpush1.msra.mxu0 0.0
    %479 = vmatprep.subr.mxu0 0.0
    %480 = vmatpush1.msra.mxu0 0.0
    %481 = vmatprep.subr.mxu0 0.0
    %482 = vmatpush1.msra.mxu0 0.0
    %483 = vmatprep.subr.mxu0 0.0
    %484 = vmatpush1.msra.mxu0 0.0
    %485 = vmatprep.subr.mxu0 0.0
    %486 = vmatpush1.msra.mxu0 0.0
    %487 = vmatprep.subr.mxu0 0.0
    %488 = vmatpush1.msra.mxu0 0.0
    %489 = vmatprep.subr.mxu0 0.0
    %490 = vmatpush1.msra.mxu0 %v454
    %491 = vmatprep.subr.mxu0 0.0
    %492 = vmatpush1.msra.mxu0 %v453
    %493 = vmatprep.subr.mxu0 0.0
    %494 = vmatpush1.msra.mxu0 %v452
    %495 = vmatprep.subr.mxu0 0.0
    %496 = vmatpush1.msra.mxu0 %v451
    %497 = vmatprep.subr.mxu0 0.0
    %498 = vmatpush2.msra.mxu0 0.0
    %499 = vmatprep.subr.mxu0 0.0
    %500 = vmatpush2.msra.mxu0 0.0
    %501 = vmatprep.subr.mxu0 0.0
    %502 = vmatpush2.msra.mxu0 0.0
    %503 = vmatprep.subr.mxu0 0.0
    %504 = vmatpush2.msra.mxu0 0.0
    %505 = vmatprep.subr.mxu0 0.0
    %506 = vmatpush2.msra.mxu0 0.0
    %507 = vmatprep.subr.mxu0 0.0
    %508 = vmatpush2.msra.mxu0 0.0
    %509 = vmatprep.subr.mxu0 0.0
    %510 = vmatpush2.msra.mxu0 0.0
    %511 = vmatprep.subr.mxu0 0.0
    %512 = vmatpush2.msra.mxu0 0.0
    %513 = vmatprep.subr.mxu0 0.0
    %514 = vmatpush2.msra.mxu0 0.0
    %515 = vmatprep.subr.mxu0 0.0
    %516 = vmatpush2.msra.mxu0 0.0
    %517 = vmatprep.subr.mxu0 0.0
    %518 = vmatpush2.msra.mxu0 0.0
    %519 = vmatprep.subr.mxu0 0.0
    %520 = vmatpush2.msra.mxu0 0.0
    %521 = vmatprep.subr.mxu0 0.0
    %522 = vmatpush2.msra.mxu0 0.0
    %523 = vmatprep.subr.mxu0 0.0
    %524 = vmatpush2.msra.mxu0 0.0
    %525 = vmatprep.subr.mxu0 0.0
    %526 = vmatpush2.msra.mxu0 0.0
    %527 = vmatprep.subr.mxu0 0.0
    %528 = vmatpush2.msra.mxu0 0.0
    %529 = vmatprep.mubr.f32.mxu0 0.0
    %530 = vmatmul.mubr.f32.gmra.mxu0 %v463
    %v531 = vpop.f32.mrf.mxu0
    %v532 = vadd.f32 %v460, %v531
    %v533 = vpop.f32.mrf.mxu0
    %534 = vdwg.mxu0
    %535 = vst.msk [vmem:[#allocation14] sm:$0xff] %vm128, %v532
    // Predicated region
    $region74: #{tpu_custom_call.1} parent=1 // pred_check
      _
    $region75: #{tpu_custom_call.1} parent=1 // pred_check_branch
      %537 = sbr.rel (0) target = $region77
    $region76: #{tpu_custom_call.1} parent=1 // pred_region
      %s539 = ssub.s32 128, 128
      %540 = vsyncadd [#allocation4], %s539
      %s542 = sshll.u32 [#allocation14], 4
      %s543 = int_to_ptr.vmem [resolvable:$true] %s542
      %545 = dma.vmem_to_hbm [thread:$0]  %s543, 128, %s11, [#allocation4]
    $region77: #{tpu_custom_call.1} parent=1 // pred_fallthru
      _
    // Predicated region
    $region78: #{tpu_custom_call.1} parent=1 // pred_check
      _
    $region79: #{tpu_custom_call.1} parent=1 // pred_check_branch
      %547 = sbr.rel (0) target = $region81
    $region80: #{tpu_custom_call.1} parent=1 // pred_region
      %548 = dma.done [#allocation4], 128
    $region81: #{tpu_custom_call.1} parent=1 // pred_fallthru
      _
    %549 = vsyncpa [#allocation3], 1
    %550 = vsyncpa [#allocation6], 1
    %551 = vsyncpa [#allocation9], 1
    %552 = vsyncpa [#allocation12], 1
    %553 = vsyncpa [#allocation4], 1

</llo_original>
